<compile_context>
chip_gen: v5e
topology: v5e:2x2
jax: 0.10.0
libtpu: 0.0.40
codegen_flags: <defaults>
</compile_context>

<pallas_src>
import functools

import numpy as np

import jax
import jax.numpy as jnp
from jax.experimental import pallas as pl
from jax.experimental.pallas import tpu as pltpu


def _round_up(x, m):
    return (x + m - 1) // m * m


def _roll_lanes(v, shift):
    """Static cyclic shift along the last (lane) axis, jnp.roll semantics
    (element k moves to k+shift).  Lowers to in-register lane rotates /
    lane-dim concat (XLU/VPU), never a cross-(8,128)-tile relayout."""
    L = v.shape[-1]
    s = shift % L
    if s == 0:
        return v
    return jnp.roll(v, s, axis=-1)


def _reflect_taps(x, row, col, *, H, W, d):
    """The 9 taps of a 3x3 conv (dilation=d) over a ReflectionPad2d(d) input,
    built directly in the flat lane-dense (C, H*W) layout.

    x   : (C, H*W) f32  -- one image, rows flattened into the lane axis
    row : (1, H*W) i32  -- lane -> image row index (q // W)
    col : (1, H*W) i32  -- lane -> image col index (q %  W)

    Returns 9 (C, H*W) values ordered (kh major, kw minor) with
      taps[kh*3+kw][c, i*W+j] = x[c, reflect(i+(kh-1)d, H), reflect(j+(kw-1)d, W)]
    Interior pixels come from one cyclic lane shift; only the d boundary
    rows/cols per side get a where() fixup (the reflection), so there are no
    masked sub-tile stores and no tile-crossing reshapes.
    """

    def shift_rows(dr):
        if dr == 0:
            return x
        v = _roll_lanes(x, -dr * W)                 # source row i+dr -> row i
        rng = range(H - d, H) if dr > 0 else range(0, d)
        for tgt in rng:                             # reflected boundary rows
            src = 2 * (H - 1) - (tgt + dr) if dr > 0 else -(tgt + dr)
            fix = _roll_lanes(x, (tgt - src) * W)
            v = jnp.where(row == tgt, fix, v)
        return v

    def shift_cols(v, dc):
        if dc == 0:
            return v
        out = _roll_lanes(v, -dc)                   # source col j+dc -> col j
        rng = range(W - d, W) if dc > 0 else range(0, d)
        for tgt in rng:                             # reflected boundary cols
            src = 2 * (W - 1) - (tgt + dc) if dc > 0 else -(tgt + dc)
            fix = _roll_lanes(v, tgt - src)
            out = jnp.where(col == tgt, fix, out)
        return out

    taps = []
    for dr in (-d, 0, d):                           # kh = 0, 1, 2
        xr = shift_rows(dr)
        for dc in (-d, 0, d):                       # kw = 0, 1, 2
            taps.append(shift_cols(xr, dc))
    return taps


def _conv3x3_instnorm(x, w_flat, row, col, *, H, W, d, eps, relu):
    """ReflectionPad(d) -> Conv3x3(dilation=d, bias=False) -> InstanceNorm
    [-> ReLU], entirely in the flat (C, H*W) layout.

    x      : (Cp, H*W) f32
    w_flat : (M, 9*Cp) f32, K ordered (kh, kw, cin)
    Returns (M, H*W) f32.
    """
    taps = _reflect_taps(x, row, col, H=H, W=W, d=d)
    # K = 9*Cp im2col as a value; every tap is an 8-aligned sublane block, so
    # this concat is plain block placement (no masked partial stores).
    colmat = jnp.concatenate(taps, axis=0)                       # (9*Cp, HW)
    # One MXU matmul per stage, f32 accumulate; lane axis stays H*W-dense.
    y = jnp.dot(w_flat, colmat, preferred_element_type=jnp.float32)  # (M, HW)
    # InstanceNorm2d(affine=False, track_running_stats=False): per-channel
    # mean / biased variance over the spatial lanes, eps inside rsqrt.
    mean = jnp.mean(y, axis=1, keepdims=True)
    c = y - mean
    var = jnp.mean(c * c, axis=1, keepdims=True)
    y = c * jax.lax.rsqrt(var + eps)
    if relu:
        y = jnp.maximum(y, 0.0)
    return y


def _conv_block_kernel(x_ref, w1_ref, w2_ref, row_ref, col_ref, o_ref,
                       *, H, W, dilation, eps):
    x = x_ref[...]                                   # (Cp, HW), lane-dense
    if x.dtype != jnp.float32:
        x = x.astype(jnp.float32)
    row = row_ref[...]                               # (1, HW) i32
    col = col_ref[...]                               # (1, HW) i32
    # Stage 1: ReflectionPad(d) -> Conv3x3(dil=d) -> InstanceNorm -> ReLU
    h = _conv3x3_instnorm(x, w1_ref[...], row, col,
                          H=H, W=W, d=dilation, eps=eps, relu=True)
    # Stage 2 (fused; h stays in VMEM and stays flat / lane-dense):
    #          ReflectionPad(1) -> Conv3x3 -> InstanceNorm
    y = _conv3x3_instnorm(h, w2_ref[...], row, col,
                          H=H, W=W, d=1, eps=eps, relu=False)
    o_ref[...] = y.astype(o_ref.dtype)               # lane-dense store (HW)


def conv_block_forward(x_nchw, w1_oihw, w2_oihw, *, dilation=1, eps=1e-5):
    """ConvBlock forward. x: (N, Cin, H, W); weights in PyTorch OIHW layout."""
    N, Cin, H, W = x_nchw.shape
    Cout = w2_oihw.shape[0]
    assert w1_oihw.shape == (Cin, Cin, 3, 3)
    assert w2_oihw.shape == (Cout, Cin, 3, 3)
    # ReflectionPad2d validity: pad < spatial size (stage1 pad=dilation, stage2 pad=1).
    assert 1 <= dilation < min(H, W)
    HW = H * W
    Cp = _round_up(Cin, 8)        # pad channels to a full sublane tile

    # Lane-dense input: free row-major reshape to (N, Cin, H*W), then channel
    # zero-pad so every per-tap K block is 8-sublane aligned.
    x = x_nchw.reshape(N, Cin, HW)
    if Cp != Cin:
        x = jnp.pad(x, ((0, 0), (0, Cp - Cin), (0, 0)))

    # OIHW -> (M, 9*Cp) with K ordered (kh, kw, cin); zero-pad cin (and the
    # stage-1 output channels) to Cp so the kernel works on 8-row blocks.
    def _flatten_w(w, m_pad):
        m = w.shape[0]
        w = jnp.transpose(w, (0, 2, 3, 1)).astype(jnp.float32)   # (M,3,3,Cin)
        w = jnp.pad(w, ((0, m_pad - m), (0, 0), (0, 0), (0, Cp - Cin)))
        return w.reshape(m_pad, 9 * Cp)

    w1 = _flatten_w(w1_oihw, Cp)        # (Cp, 9*Cp); padded out-channels = 0
    w2 = _flatten_w(w2_oihw, Cout)      # (Cout, 9*Cp)

    # Static lane -> (row, col) maps used by the reflection boundary fixups.
    rowmap = jnp.asarray(np.repeat(np.arange(H, dtype=np.int32), W).reshape(1, HW))
    colmap = jnp.asarray(np.tile(np.arange(W, dtype=np.int32), H).reshape(1, HW))

    kernel = functools.partial(_conv_block_kernel, H=H, W=W,
                               dilation=dilation, eps=eps)

    out_flat = pl.pallas_call(
        kernel,
        out_shape=jax.ShapeDtypeStruct((N, Cout, HW), x_nchw.dtype),
        grid_spec=pltpu.PrefetchScalarGridSpec(
            num_scalar_prefetch=0,
            grid=(N,),
            in_specs=[
                pl.BlockSpec((None, Cp, HW), lambda n: (n, 0, 0)),
                pl.BlockSpec((Cp, 9 * Cp), lambda n: (0, 0)),
                pl.BlockSpec((Cout, 9 * Cp), lambda n: (0, 0)),
                pl.BlockSpec((1, HW), lambda n: (0, 0)),
                pl.BlockSpec((1, HW), lambda n: (0, 0)),
            ],
            out_specs=pl.BlockSpec((None, Cout, HW), lambda n: (n, 0, 0)),
        ),
        compiler_params=pltpu.CompilerParams(
            dimension_semantics=("parallel",)),
    )(x, w1, w2, rowmap, colmap)
    return out_flat.reshape(N, Cout, H, W)      # free row-major reshape


def init_conv_block_params(key, in_dim, out_dim):
    """Deterministic weight init in PyTorch Conv2d layout (Cout, Cin, 3, 3)."""
    k1, k2 = jax.random.split(key)
    fan_in = in_dim * 9
    w1 = jax.random.uniform(k1, (in_dim, in_dim, 3, 3), jnp.float32,
                            minval=-1.0, maxval=1.0) / jnp.sqrt(fan_in)
    w2 = jax.random.uniform(k2, (out_dim, in_dim, 3, 3), jnp.float32,
                            minval=-1.0, maxval=1.0) / jnp.sqrt(fan_in)
    return w1, w2


def _reference_forward(x, w1, w2, *, dilation, eps=1e-5):
    """Pure-JAX reference (ReflectionPad+Conv+IN[+ReLU]) x2, for validation."""
    def conv_in(x, w, d, relu):
        xp = jnp.pad(x, ((0, 0), (0, 0), (d, d), (d, d)), mode="reflect")
        y = jax.lax.conv_general_dilated(
            xp, w, window_strides=(1, 1), padding="VALID",
            rhs_dilation=(d, d),
            dimension_numbers=("NCHW", "OIHW", "NCHW"),
            precision=jax.lax.Precision.HIGHEST)
        mean = jnp.mean(y, axis=(2, 3), keepdims=True)
        var = jnp.mean((y - mean) ** 2, axis=(2, 3), keepdims=True)
        y = (y - mean) * jax.lax.rsqrt(var + eps)
        return jnp.maximum(y, 0.0) if relu else y
    h = conv_in(x, w1, dilation, True)
    return conv_in(h, w2, 1, False)


if __name__ == "__main__":
    key = jax.random.PRNGKey(0)
    kx, kw = jax.random.split(key)

    N, Cin, Cout, H, W = 2, 4, 8, 16, 16
    dilation = 2

    x = jax.random.normal(kx, (N, Cin, H, W), jnp.float32)
    w1, w2 = init_conv_block_params(kw, Cin, Cout)

    out = jax.block_until_ready(conv_block_forward(x, w1, w2, dilation=dilation))

    assert out.shape == (N, Cout, H, W), out.shape
    assert bool(jnp.all(jnp.isfinite(out)))

    ref = jax.block_until_ready(_reference_forward(x, w1, w2, dilation=dilation))
    max_err = float(jnp.max(jnp.abs(out - ref)))
    assert bool(jnp.allclose(out, ref, atol=1e-3, rtol=1e-3)), max_err

    print("KERNEL_OK")
</pallas_src>

<mosaic_0001>
module attributes {stable_mosaic.version = 11 : i64} {
  func.func @_conv_block_kernel(%arg0: i32, %arg1: memref<1x8x256xf32, #tpu.memory_space<vmem>>, %arg2: memref<8x72xf32, #tpu.memory_space<vmem>>, %arg3: memref<8x72xf32, #tpu.memory_space<vmem>>, %arg4: memref<1x256xi32, #tpu.memory_space<vmem>>, %arg5: memref<1x256xi32, #tpu.memory_space<vmem>>, %arg6: memref<1x8x256xf32, #tpu.memory_space<vmem>>) attributes {dimension_semantics = [#tpu.dimension_semantics<parallel>], iteration_bounds = array<i64: 2>, scalar_prefetch = 0 : i64, scratch_operands = 0 : i64, tpu.core_type = #tpu.core_type<tc>, window_params = [{transform_indices = @transform_0, window_bounds = array<i64: 1, 8, 256>}, {pipeline_mode = #tpu.pipeline_mode<synchronous>, transform_indices = @transform_1, window_bounds = array<i64: 8, 72>}, {pipeline_mode = #tpu.pipeline_mode<synchronous>, transform_indices = @transform_2, window_bounds = array<i64: 8, 72>}, {pipeline_mode = #tpu.pipeline_mode<synchronous>, transform_indices = @transform_3, window_bounds = array<i64: 1, 256>}, {pipeline_mode = #tpu.pipeline_mode<synchronous>, transform_indices = @transform_4, window_bounds = array<i64: 1, 256>}, {transform_indices = @transform_5, window_bounds = array<i64: 1, 8, 256>}]} {
    %c0 = arith.constant 0 : index
    %c0_0 = arith.constant 0 : index
    %c0_1 = arith.constant 0 : index
    %0 = vector.load %arg1[%c0, %c0_0, %c0_1] : memref<1x8x256xf32, #tpu.memory_space<vmem>>, vector<1x8x256xf32>
    %1 = vector.shape_cast %0 : vector<1x8x256xf32> to vector<8x256xf32>
    %c0_2 = arith.constant 0 : index
    %c0_3 = arith.constant 0 : index
    %2 = vector.load %arg4[%c0_2, %c0_3] : memref<1x256xi32, #tpu.memory_space<vmem>>, vector<1x256xi32>
    %c0_4 = arith.constant 0 : index
    %c0_5 = arith.constant 0 : index
    %3 = vector.load %arg5[%c0_4, %c0_5] : memref<1x256xi32, #tpu.memory_space<vmem>>, vector<1x256xi32>
    %c0_6 = arith.constant 0 : index
    %c0_7 = arith.constant 0 : index
    %4 = vector.load %arg2[%c0_6, %c0_7] : memref<8x72xf32, #tpu.memory_space<vmem>>, vector<8x72xf32>
    %5 = vector.extract_strided_slice %1 {offsets = [0, 224], sizes = [8, 32], strides = [1, 1]} : vector<8x256xf32> to vector<8x32xf32>
    %6 = vector.extract_strided_slice %1 {offsets = [0, 0], sizes = [8, 224], strides = [1, 1]} : vector<8x256xf32> to vector<8x224xf32>
    %7 = tpu.concatenate %5, %6 in 1 : vector<8x32xf32>, vector<8x224xf32> -> vector<8x256xf32>
    %8 = vector.extract_strided_slice %1 {offsets = [0, 32], sizes = [8, 224], strides = [1, 1]} : vector<8x256xf32> to vector<8x224xf32>
    %9 = vector.extract_strided_slice %1 {offsets = [0, 0], sizes = [8, 32], strides = [1, 1]} : vector<8x256xf32> to vector<8x32xf32>
    %10 = tpu.concatenate %8, %9 in 1 : vector<8x224xf32>, vector<8x32xf32> -> vector<8x256xf32>
    %c0_i32 = arith.constant 0 : i32
    %11 = vector.broadcast %c0_i32 : i32 to vector<1x256xi32>
    %12 = arith.cmpi eq, %2, %11 : vector<1x256xi32>
    %13 = vector.shape_cast %12 : vector<1x256xi1> to vector<1x256xi1>
    %14 = vector.broadcast %13 : vector<1x256xi1> to vector<8x256xi1>
    %15 = arith.select %14, %10, %7 : vector<8x256xi1>, vector<8x256xf32>
    %c1_i32 = arith.constant 1 : i32
    %16 = vector.broadcast %c1_i32 : i32 to vector<1x256xi32>
    %17 = arith.cmpi eq, %2, %16 : vector<1x256xi32>
    %18 = vector.shape_cast %17 : vector<1x256xi1> to vector<1x256xi1>
    %19 = vector.broadcast %18 : vector<1x256xi1> to vector<8x256xi1>
    %20 = arith.select %19, %1, %15 : vector<8x256xi1>, vector<8x256xf32>
    %21 = vector.extract_strided_slice %20 {offsets = [0, 254], sizes = [8, 2], strides = [1, 1]} : vector<8x256xf32> to vector<8x2xf32>
    %22 = vector.extract_strided_slice %20 {offsets = [0, 0], sizes = [8, 254], strides = [1, 1]} : vector<8x256xf32> to vector<8x254xf32>
    %23 = tpu.concatenate %21, %22 in 1 : vector<8x2xf32>, vector<8x254xf32> -> vector<8x256xf32>
    %24 = vector.extract_strided_slice %20 {offsets = [0, 2], sizes = [8, 254], strides = [1, 1]} : vector<8x256xf32> to vector<8x254xf32>
    %25 = vector.extract_strided_slice %20 {offsets = [0, 0], sizes = [8, 2], strides = [1, 1]} : vector<8x256xf32> to vector<8x2xf32>
    %26 = tpu.concatenate %24, %25 in 1 : vector<8x254xf32>, vector<8x2xf32> -> vector<8x256xf32>
    %c0_i32_8 = arith.constant 0 : i32
    %27 = vector.broadcast %c0_i32_8 : i32 to vector<1x256xi32>
    %28 = arith.cmpi eq, %3, %27 : vector<1x256xi32>
    %29 = vector.shape_cast %28 : vector<1x256xi1> to vector<1x256xi1>
    %30 = vector.broadcast %29 : vector<1x256xi1> to vector<8x256xi1>
    %31 = arith.select %30, %26, %23 : vector<8x256xi1>, vector<8x256xf32>
    %c1_i32_9 = arith.constant 1 : i32
    %32 = vector.broadcast %c1_i32_9 : i32 to vector<1x256xi32>
    %33 = arith.cmpi eq, %3, %32 : vector<1x256xi32>
    %34 = vector.shape_cast %33 : vector<1x256xi1> to vector<1x256xi1>
    %35 = vector.broadcast %34 : vector<1x256xi1> to vector<8x256xi1>
    %36 = arith.select %35, %20, %31 : vector<8x256xi1>, vector<8x256xf32>
    %37 = vector.extract_strided_slice %20 {offsets = [0, 2], sizes = [8, 254], strides = [1, 1]} : vector<8x256xf32> to vector<8x254xf32>
    %38 = vector.extract_strided_slice %20 {offsets = [0, 0], sizes = [8, 2], strides = [1, 1]} : vector<8x256xf32> to vector<8x2xf32>
    %39 = tpu.concatenate %37, %38 in 1 : vector<8x254xf32>, vector<8x2xf32> -> vector<8x256xf32>
    %c14_i32 = arith.constant 14 : i32
    %40 = vector.broadcast %c14_i32 : i32 to vector<1x256xi32>
    %41 = arith.cmpi eq, %3, %40 : vector<1x256xi32>
    %42 = vector.shape_cast %41 : vector<1x256xi1> to vector<1x256xi1>
    %43 = vector.broadcast %42 : vector<1x256xi1> to vector<8x256xi1>
    %44 = arith.select %43, %20, %39 : vector<8x256xi1>, vector<8x256xf32>
    %45 = vector.extract_strided_slice %20 {offsets = [0, 254], sizes = [8, 2], strides = [1, 1]} : vector<8x256xf32> to vector<8x2xf32>
    %46 = vector.extract_strided_slice %20 {offsets = [0, 0], sizes = [8, 254], strides = [1, 1]} : vector<8x256xf32> to vector<8x254xf32>
    %47 = tpu.concatenate %45, %46 in 1 : vector<8x2xf32>, vector<8x254xf32> -> vector<8x256xf32>
    %c15_i32 = arith.constant 15 : i32
    %48 = vector.broadcast %c15_i32 : i32 to vector<1x256xi32>
    %49 = arith.cmpi eq, %3, %48 : vector<1x256xi32>
    %50 = vector.shape_cast %49 : vector<1x256xi1> to vector<1x256xi1>
    %51 = vector.broadcast %50 : vector<1x256xi1> to vector<8x256xi1>
    %52 = arith.select %51, %47, %44 : vector<8x256xi1>, vector<8x256xf32>
    %53 = vector.extract_strided_slice %1 {offsets = [0, 254], sizes = [8, 2], strides = [1, 1]} : vector<8x256xf32> to vector<8x2xf32>
    %54 = vector.extract_strided_slice %1 {offsets = [0, 0], sizes = [8, 254], strides = [1, 1]} : vector<8x256xf32> to vector<8x254xf32>
    %55 = tpu.concatenate %53, %54 in 1 : vector<8x2xf32>, vector<8x254xf32> -> vector<8x256xf32>
    %56 = vector.extract_strided_slice %1 {offsets = [0, 2], sizes = [8, 254], strides = [1, 1]} : vector<8x256xf32> to vector<8x254xf32>
    %57 = vector.extract_strided_slice %1 {offsets = [0, 0], sizes = [8, 2], strides = [1, 1]} : vector<8x256xf32> to vector<8x2xf32>
    %58 = tpu.concatenate %56, %57 in 1 : vector<8x254xf32>, vector<8x2xf32> -> vector<8x256xf32>
    %c0_i32_10 = arith.constant 0 : i32
    %59 = vector.broadcast %c0_i32_10 : i32 to vector<1x256xi32>
    %60 = arith.cmpi eq, %3, %59 : vector<1x256xi32>
    %61 = vector.shape_cast %60 : vector<1x256xi1> to vector<1x256xi1>
    %62 = vector.broadcast %61 : vector<1x256xi1> to vector<8x256xi1>
    %63 = arith.select %62, %58, %55 : vector<8x256xi1>, vector<8x256xf32>
    %c1_i32_11 = arith.constant 1 : i32
    %64 = vector.broadcast %c1_i32_11 : i32 to vector<1x256xi32>
    %65 = arith.cmpi eq, %3, %64 : vector<1x256xi32>
    %66 = vector.shape_cast %65 : vector<1x256xi1> to vector<1x256xi1>
    %67 = vector.broadcast %66 : vector<1x256xi1> to vector<8x256xi1>
    %68 = arith.select %67, %1, %63 : vector<8x256xi1>, vector<8x256xf32>
    %69 = vector.extract_strided_slice %1 {offsets = [0, 2], sizes = [8, 254], strides = [1, 1]} : vector<8x256xf32> to vector<8x254xf32>
    %70 = vector.extract_strided_slice %1 {offsets = [0, 0], sizes = [8, 2], strides = [1, 1]} : vector<8x256xf32> to vector<8x2xf32>
    %71 = tpu.concatenate %69, %70 in 1 : vector<8x254xf32>, vector<8x2xf32> -> vector<8x256xf32>
    %c14_i32_12 = arith.constant 14 : i32
    %72 = vector.broadcast %c14_i32_12 : i32 to vector<1x256xi32>
    %73 = arith.cmpi eq, %3, %72 : vector<1x256xi32>
    %74 = vector.shape_cast %73 : vector<1x256xi1> to vector<1x256xi1>
    %75 = vector.broadcast %74 : vector<1x256xi1> to vector<8x256xi1>
    %76 = arith.select %75, %1, %71 : vector<8x256xi1>, vector<8x256xf32>
    %77 = vector.extract_strided_slice %1 {offsets = [0, 254], sizes = [8, 2], strides = [1, 1]} : vector<8x256xf32> to vector<8x2xf32>
    %78 = vector.extract_strided_slice %1 {offsets = [0, 0], sizes = [8, 254], strides = [1, 1]} : vector<8x256xf32> to vector<8x254xf32>
    %79 = tpu.concatenate %77, %78 in 1 : vector<8x2xf32>, vector<8x254xf32> -> vector<8x256xf32>
    %c15_i32_13 = arith.constant 15 : i32
    %80 = vector.broadcast %c15_i32_13 : i32 to vector<1x256xi32>
    %81 = arith.cmpi eq, %3, %80 : vector<1x256xi32>
    %82 = vector.shape_cast %81 : vector<1x256xi1> to vector<1x256xi1>
    %83 = vector.broadcast %82 : vector<1x256xi1> to vector<8x256xi1>
    %84 = arith.select %83, %79, %76 : vector<8x256xi1>, vector<8x256xf32>
    %85 = vector.extract_strided_slice %1 {offsets = [0, 32], sizes = [8, 224], strides = [1, 1]} : vector<8x256xf32> to vector<8x224xf32>
    %86 = vector.extract_strided_slice %1 {offsets = [0, 0], sizes = [8, 32], strides = [1, 1]} : vector<8x256xf32> to vector<8x32xf32>
    %87 = tpu.concatenate %85, %86 in 1 : vector<8x224xf32>, vector<8x32xf32> -> vector<8x256xf32>
    %c14_i32_14 = arith.constant 14 : i32
    %88 = vector.broadcast %c14_i32_14 : i32 to vector<1x256xi32>
    %89 = arith.cmpi eq, %2, %88 : vector<1x256xi32>
    %90 = vector.shape_cast %89 : vector<1x256xi1> to vector<1x256xi1>
    %91 = vector.broadcast %90 : vector<1x256xi1> to vector<8x256xi1>
    %92 = arith.select %91, %1, %87 : vector<8x256xi1>, vector<8x256xf32>
    %93 = vector.extract_strided_slice %1 {offsets = [0, 224], sizes = [8, 32], strides = [1, 1]} : vector<8x256xf32> to vector<8x32xf32>
    %94 = vector.extract_strided_slice %1 {offsets = [0, 0], sizes = [8, 224], strides = [1, 1]} : vector<8x256xf32> to vector<8x224xf32>
    %95 = tpu.concatenate %93, %94 in 1 : vector<8x32xf32>, vector<8x224xf32> -> vector<8x256xf32>
    %c15_i32_15 = arith.constant 15 : i32
    %96 = vector.broadcast %c15_i32_15 : i32 to vector<1x256xi32>
    %97 = arith.cmpi eq, %2, %96 : vector<1x256xi32>
    %98 = vector.shape_cast %97 : vector<1x256xi1> to vector<1x256xi1>
    %99 = vector.broadcast %98 : vector<1x256xi1> to vector<8x256xi1>
    %100 = arith.select %99, %95, %92 : vector<8x256xi1>, vector<8x256xf32>
    %101 = vector.extract_strided_slice %100 {offsets = [0, 254], sizes = [8, 2], strides = [1, 1]} : vector<8x256xf32> to vector<8x2xf32>
    %102 = vector.extract_strided_slice %100 {offsets = [0, 0], sizes = [8, 254], strides = [1, 1]} : vector<8x256xf32> to vector<8x254xf32>
    %103 = tpu.concatenate %101, %102 in 1 : vector<8x2xf32>, vector<8x254xf32> -> vector<8x256xf32>
    %104 = vector.extract_strided_slice %100 {offsets = [0, 2], sizes = [8, 254], strides = [1, 1]} : vector<8x256xf32> to vector<8x254xf32>
    %105 = vector.extract_strided_slice %100 {offsets = [0, 0], sizes = [8, 2], strides = [1, 1]} : vector<8x256xf32> to vector<8x2xf32>
    %106 = tpu.concatenate %104, %105 in 1 : vector<8x254xf32>, vector<8x2xf32> -> vector<8x256xf32>
    %c0_i32_16 = arith.constant 0 : i32
    %107 = vector.broadcast %c0_i32_16 : i32 to vector<1x256xi32>
    %108 = arith.cmpi eq, %3, %107 : vector<1x256xi32>
    %109 = vector.shape_cast %108 : vector<1x256xi1> to vector<1x256xi1>
    %110 = vector.broadcast %109 : vector<1x256xi1> to vector<8x256xi1>
    %111 = arith.select %110, %106, %103 : vector<8x256xi1>, vector<8x256xf32>
    %c1_i32_17 = arith.constant 1 : i32
    %112 = vector.broadcast %c1_i32_17 : i32 to vector<1x256xi32>
    %113 = arith.cmpi eq, %3, %112 : vector<1x256xi32>
    %114 = vector.shape_cast %113 : vector<1x256xi1> to vector<1x256xi1>
    %115 = vector.broadcast %114 : vector<1x256xi1> to vector<8x256xi1>
    %116 = arith.select %115, %100, %111 : vector<8x256xi1>, vector<8x256xf32>
    %117 = vector.extract_strided_slice %100 {offsets = [0, 2], sizes = [8, 254], strides = [1, 1]} : vector<8x256xf32> to vector<8x254xf32>
    %118 = vector.extract_strided_slice %100 {offsets = [0, 0], sizes = [8, 2], strides = [1, 1]} : vector<8x256xf32> to vector<8x2xf32>
    %119 = tpu.concatenate %117, %118 in 1 : vector<8x254xf32>, vector<8x2xf32> -> vector<8x256xf32>
    %c14_i32_18 = arith.constant 14 : i32
    %120 = vector.broadcast %c14_i32_18 : i32 to vector<1x256xi32>
    %121 = arith.cmpi eq, %3, %120 : vector<1x256xi32>
    %122 = vector.shape_cast %121 : vector<1x256xi1> to vector<1x256xi1>
    %123 = vector.broadcast %122 : vector<1x256xi1> to vector<8x256xi1>
    %124 = arith.select %123, %100, %119 : vector<8x256xi1>, vector<8x256xf32>
    %125 = vector.extract_strided_slice %100 {offsets = [0, 254], sizes = [8, 2], strides = [1, 1]} : vector<8x256xf32> to vector<8x2xf32>
    %126 = vector.extract_strided_slice %100 {offsets = [0, 0], sizes = [8, 254], strides = [1, 1]} : vector<8x256xf32> to vector<8x254xf32>
    %127 = tpu.concatenate %125, %126 in 1 : vector<8x2xf32>, vector<8x254xf32> -> vector<8x256xf32>
    %c15_i32_19 = arith.constant 15 : i32
    %128 = vector.broadcast %c15_i32_19 : i32 to vector<1x256xi32>
    %129 = arith.cmpi eq, %3, %128 : vector<1x256xi32>
    %130 = vector.shape_cast %129 : vector<1x256xi1> to vector<1x256xi1>
    %131 = vector.broadcast %130 : vector<1x256xi1> to vector<8x256xi1>
    %132 = arith.select %131, %127, %124 : vector<8x256xi1>, vector<8x256xf32>
    %133 = tpu.concatenate %36, %20, %52, %68, %1, %84, %116, %100, %132 in 0 : vector<8x256xf32>, vector<8x256xf32>, vector<8x256xf32>, vector<8x256xf32>, vector<8x256xf32>, vector<8x256xf32>, vector<8x256xf32>, vector<8x256xf32>, vector<8x256xf32> -> vector<72x256xf32>
    %cst = arith.constant dense<0.000000e+00> : vector<8x256xf32>
    %134 = tpu.matmul %4, %133, %cst {dimension_numbers = #tpu.dot_dimension_numbers<[1], [0], [0], [1], [0, 0, 1, 1], [], []>} : vector<8x72xf32>, vector<72x256xf32>, vector<8x256xf32> -> vector<8x256xf32>
    %cst_20 = arith.constant dense<0.000000e+00> : vector<8xf32>
    %135 = vector.multi_reduction <add>, %134, %cst_20 [1] : vector<8x256xf32> to vector<8xf32>
    %136 = vector.shape_cast %135 : vector<8xf32> to vector<8x1xf32>
    %cst_21 = arith.constant 2.560000e+02 : f32
    %137 = vector.broadcast %cst_21 : f32 to vector<8x1xf32>
    %138 = arith.divf %136, %137 : vector<8x1xf32>
    %139 = vector.broadcast %138 : vector<8x1xf32> to vector<8x256xf32>
    %140 = arith.subf %134, %139 : vector<8x256xf32>
    %141 = arith.mulf %140, %140 : vector<8x256xf32>
    %cst_22 = arith.constant dense<0.000000e+00> : vector<8xf32>
    %142 = vector.multi_reduction <add>, %141, %cst_22 [1] : vector<8x256xf32> to vector<8xf32>
    %143 = vector.shape_cast %142 : vector<8xf32> to vector<8x1xf32>
    %cst_23 = arith.constant 2.560000e+02 : f32
    %144 = vector.broadcast %cst_23 : f32 to vector<8x1xf32>
    %145 = arith.divf %143, %144 : vector<8x1xf32>
    %cst_24 = arith.constant 9.99999974E-6 : f32
    %146 = vector.broadcast %cst_24 : f32 to vector<8x1xf32>
    %147 = arith.addf %145, %146 : vector<8x1xf32>
    %148 = math.rsqrt %147 : vector<8x1xf32>
    %149 = vector.broadcast %148 : vector<8x1xf32> to vector<8x256xf32>
    %150 = arith.mulf %140, %149 : vector<8x256xf32>
    %cst_25 = arith.constant 0.000000e+00 : f32
    %151 = vector.broadcast %cst_25 : f32 to vector<8x256xf32>
    %152 = arith.maximumf %150, %151 : vector<8x256xf32>
    %c0_26 = arith.constant 0 : index
    %c0_27 = arith.constant 0 : index
    %153 = vector.load %arg3[%c0_26, %c0_27] : memref<8x72xf32, #tpu.memory_space<vmem>>, vector<8x72xf32>
    %154 = vector.extract_strided_slice %152 {offsets = [0, 240], sizes = [8, 16], strides = [1, 1]} : vector<8x256xf32> to vector<8x16xf32>
    %155 = vector.extract_strided_slice %152 {offsets = [0, 0], sizes = [8, 240], strides = [1, 1]} : vector<8x256xf32> to vector<8x240xf32>
    %156 = tpu.concatenate %154, %155 in 1 : vector<8x16xf32>, vector<8x240xf32> -> vector<8x256xf32>
    %157 = vector.extract_strided_slice %152 {offsets = [0, 16], sizes = [8, 240], strides = [1, 1]} : vector<8x256xf32> to vector<8x240xf32>
    %158 = vector.extract_strided_slice %152 {offsets = [0, 0], sizes = [8, 16], strides = [1, 1]} : vector<8x256xf32> to vector<8x16xf32>
    %159 = tpu.concatenate %157, %158 in 1 : vector<8x240xf32>, vector<8x16xf32> -> vector<8x256xf32>
    %c0_i32_28 = arith.constant 0 : i32
    %160 = vector.broadcast %c0_i32_28 : i32 to vector<1x256xi32>
    %161 = arith.cmpi eq, %2, %160 : vector<1x256xi32>
    %162 = vector.shape_cast %161 : vector<1x256xi1> to vector<1x256xi1>
    %163 = vector.broadcast %162 : vector<1x256xi1> to vector<8x256xi1>
    %164 = arith.select %163, %159, %156 : vector<8x256xi1>, vector<8x256xf32>
    %165 = vector.extract_strided_slice %164 {offsets = [0, 255], sizes = [8, 1], strides = [1, 1]} : vector<8x256xf32> to vector<8x1xf32>
    %166 = vector.extract_strided_slice %164 {offsets = [0, 0], sizes = [8, 255], strides = [1, 1]} : vector<8x256xf32> to vector<8x255xf32>
    %167 = tpu.concatenate %165, %166 in 1 : vector<8x1xf32>, vector<8x255xf32> -> vector<8x256xf32>
    %168 = vector.extract_strided_slice %164 {offsets = [0, 1], sizes = [8, 255], strides = [1, 1]} : vector<8x256xf32> to vector<8x255xf32>
    %169 = vector.extract_strided_slice %164 {offsets = [0, 0], sizes = [8, 1], strides = [1, 1]} : vector<8x256xf32> to vector<8x1xf32>
    %170 = tpu.concatenate %168, %169 in 1 : vector<8x255xf32>, vector<8x1xf32> -> vector<8x256xf32>
    %c0_i32_29 = arith.constant 0 : i32
    %171 = vector.broadcast %c0_i32_29 : i32 to vector<1x256xi32>
    %172 = arith.cmpi eq, %3, %171 : vector<1x256xi32>
    %173 = vector.shape_cast %172 : vector<1x256xi1> to vector<1x256xi1>
    %174 = vector.broadcast %173 : vector<1x256xi1> to vector<8x256xi1>
    %175 = arith.select %174, %170, %167 : vector<8x256xi1>, vector<8x256xf32>
    %176 = vector.extract_strided_slice %164 {offsets = [0, 1], sizes = [8, 255], strides = [1, 1]} : vector<8x256xf32> to vector<8x255xf32>
    %177 = vector.extract_strided_slice %164 {offsets = [0, 0], sizes = [8, 1], strides = [1, 1]} : vector<8x256xf32> to vector<8x1xf32>
    %178 = tpu.concatenate %176, %177 in 1 : vector<8x255xf32>, vector<8x1xf32> -> vector<8x256xf32>
    %179 = vector.extract_strided_slice %164 {offsets = [0, 255], sizes = [8, 1], strides = [1, 1]} : vector<8x256xf32> to vector<8x1xf32>
    %180 = vector.extract_strided_slice %164 {offsets = [0, 0], sizes = [8, 255], strides = [1, 1]} : vector<8x256xf32> to vector<8x255xf32>
    %181 = tpu.concatenate %179, %180 in 1 : vector<8x1xf32>, vector<8x255xf32> -> vector<8x256xf32>
    %c15_i32_30 = arith.constant 15 : i32
    %182 = vector.broadcast %c15_i32_30 : i32 to vector<1x256xi32>
    %183 = arith.cmpi eq, %3, %182 : vector<1x256xi32>
    %184 = vector.shape_cast %183 : vector<1x256xi1> to vector<1x256xi1>
    %185 = vector.broadcast %184 : vector<1x256xi1> to vector<8x256xi1>
    %186 = arith.select %185, %181, %178 : vector<8x256xi1>, vector<8x256xf32>
    %187 = vector.extract_strided_slice %152 {offsets = [0, 255], sizes = [8, 1], strides = [1, 1]} : vector<8x256xf32> to vector<8x1xf32>
    %188 = vector.extract_strided_slice %152 {offsets = [0, 0], sizes = [8, 255], strides = [1, 1]} : vector<8x256xf32> to vector<8x255xf32>
    %189 = tpu.concatenate %187, %188 in 1 : vector<8x1xf32>, vector<8x255xf32> -> vector<8x256xf32>
    %190 = vector.extract_strided_slice %152 {offsets = [0, 1], sizes = [8, 255], strides = [1, 1]} : vector<8x256xf32> to vector<8x255xf32>
    %191 = vector.extract_strided_slice %152 {offsets = [0, 0], sizes = [8, 1], strides = [1, 1]} : vector<8x256xf32> to vector<8x1xf32>
    %192 = tpu.concatenate %190, %191 in 1 : vector<8x255xf32>, vector<8x1xf32> -> vector<8x256xf32>
    %c0_i32_31 = arith.constant 0 : i32
    %193 = vector.broadcast %c0_i32_31 : i32 to vector<1x256xi32>
    %194 = arith.cmpi eq, %3, %193 : vector<1x256xi32>
    %195 = vector.shape_cast %194 : vector<1x256xi1> to vector<1x256xi1>
    %196 = vector.broadcast %195 : vector<1x256xi1> to vector<8x256xi1>
    %197 = arith.select %196, %192, %189 : vector<8x256xi1>, vector<8x256xf32>
    %198 = vector.extract_strided_slice %152 {offsets = [0, 1], sizes = [8, 255], strides = [1, 1]} : vector<8x256xf32> to vector<8x255xf32>
    %199 = vector.extract_strided_slice %152 {offsets = [0, 0], sizes = [8, 1], strides = [1, 1]} : vector<8x256xf32> to vector<8x1xf32>
    %200 = tpu.concatenate %198, %199 in 1 : vector<8x255xf32>, vector<8x1xf32> -> vector<8x256xf32>
    %201 = vector.extract_strided_slice %152 {offsets = [0, 255], sizes = [8, 1], strides = [1, 1]} : vector<8x256xf32> to vector<8x1xf32>
    %202 = vector.extract_strided_slice %152 {offsets = [0, 0], sizes = [8, 255], strides = [1, 1]} : vector<8x256xf32> to vector<8x255xf32>
    %203 = tpu.concatenate %201, %202 in 1 : vector<8x1xf32>, vector<8x255xf32> -> vector<8x256xf32>
    %c15_i32_32 = arith.constant 15 : i32
    %204 = vector.broadcast %c15_i32_32 : i32 to vector<1x256xi32>
    %205 = arith.cmpi eq, %3, %204 : vector<1x256xi32>
    %206 = vector.shape_cast %205 : vector<1x256xi1> to vector<1x256xi1>
    %207 = vector.broadcast %206 : vector<1x256xi1> to vector<8x256xi1>
    %208 = arith.select %207, %203, %200 : vector<8x256xi1>, vector<8x256xf32>
    %209 = vector.extract_strided_slice %152 {offsets = [0, 16], sizes = [8, 240], strides = [1, 1]} : vector<8x256xf32> to vector<8x240xf32>
    %210 = vector.extract_strided_slice %152 {offsets = [0, 0], sizes = [8, 16], strides = [1, 1]} : vector<8x256xf32> to vector<8x16xf32>
    %211 = tpu.concatenate %209, %210 in 1 : vector<8x240xf32>, vector<8x16xf32> -> vector<8x256xf32>
    %212 = vector.extract_strided_slice %152 {offsets = [0, 240], sizes = [8, 16], strides = [1, 1]} : vector<8x256xf32> to vector<8x16xf32>
    %213 = vector.extract_strided_slice %152 {offsets = [0, 0], sizes = [8, 240], strides = [1, 1]} : vector<8x256xf32> to vector<8x240xf32>
    %214 = tpu.concatenate %212, %213 in 1 : vector<8x16xf32>, vector<8x240xf32> -> vector<8x256xf32>
    %c15_i32_33 = arith.constant 15 : i32
    %215 = vector.broadcast %c15_i32_33 : i32 to vector<1x256xi32>
    %216 = arith.cmpi eq, %2, %215 : vector<1x256xi32>
    %217 = vector.shape_cast %216 : vector<1x256xi1> to vector<1x256xi1>
    %218 = vector.broadcast %217 : vector<1x256xi1> to vector<8x256xi1>
    %219 = arith.select %218, %214, %211 : vector<8x256xi1>, vector<8x256xf32>
    %220 = vector.extract_strided_slice %219 {offsets = [0, 255], sizes = [8, 1], strides = [1, 1]} : vector<8x256xf32> to vector<8x1xf32>
    %221 = vector.extract_strided_slice %219 {offsets = [0, 0], sizes = [8, 255], strides = [1, 1]} : vector<8x256xf32> to vector<8x255xf32>
    %222 = tpu.concatenate %220, %221 in 1 : vector<8x1xf32>, vector<8x255xf32> -> vector<8x256xf32>
    %223 = vector.extract_strided_slice %219 {offsets = [0, 1], sizes = [8, 255], strides = [1, 1]} : vector<8x256xf32> to vector<8x255xf32>
    %224 = vector.extract_strided_slice %219 {offsets = [0, 0], sizes = [8, 1], strides = [1, 1]} : vector<8x256xf32> to vector<8x1xf32>
    %225 = tpu.concatenate %223, %224 in 1 : vector<8x255xf32>, vector<8x1xf32> -> vector<8x256xf32>
    %c0_i32_34 = arith.constant 0 : i32
    %226 = vector.broadcast %c0_i32_34 : i32 to vector<1x256xi32>
    %227 = arith.cmpi eq, %3, %226 : vector<1x256xi32>
    %228 = vector.shape_cast %227 : vector<1x256xi1> to vector<1x256xi1>
    %229 = vector.broadcast %228 : vector<1x256xi1> to vector<8x256xi1>
    %230 = arith.select %229, %225, %222 : vector<8x256xi1>, vector<8x256xf32>
    %231 = vector.extract_strided_slice %219 {offsets = [0, 1], sizes = [8, 255], strides = [1, 1]} : vector<8x256xf32> to vector<8x255xf32>
    %232 = vector.extract_strided_slice %219 {offsets = [0, 0], sizes = [8, 1], strides = [1, 1]} : vector<8x256xf32> to vector<8x1xf32>
    %233 = tpu.concatenate %231, %232 in 1 : vector<8x255xf32>, vector<8x1xf32> -> vector<8x256xf32>
    %234 = vector.extract_strided_slice %219 {offsets = [0, 255], sizes = [8, 1], strides = [1, 1]} : vector<8x256xf32> to vector<8x1xf32>
    %235 = vector.extract_strided_slice %219 {offsets = [0, 0], sizes = [8, 255], strides = [1, 1]} : vector<8x256xf32> to vector<8x255xf32>
    %236 = tpu.concatenate %234, %235 in 1 : vector<8x1xf32>, vector<8x255xf32> -> vector<8x256xf32>
    %c15_i32_35 = arith.constant 15 : i32
    %237 = vector.broadcast %c15_i32_35 : i32 to vector<1x256xi32>
    %238 = arith.cmpi eq, %3, %237 : vector<1x256xi32>
    %239 = vector.shape_cast %238 : vector<1x256xi1> to vector<1x256xi1>
    %240 = vector.broadcast %239 : vector<1x256xi1> to vector<8x256xi1>
    %241 = arith.select %240, %236, %233 : vector<8x256xi1>, vector<8x256xf32>
    %242 = tpu.concatenate %175, %164, %186, %197, %152, %208, %230, %219, %241 in 0 : vector<8x256xf32>, vector<8x256xf32>, vector<8x256xf32>, vector<8x256xf32>, vector<8x256xf32>, vector<8x256xf32>, vector<8x256xf32>, vector<8x256xf32>, vector<8x256xf32> -> vector<72x256xf32>
    %cst_36 = arith.constant dense<0.000000e+00> : vector<8x256xf32>
    %243 = tpu.matmul %153, %242, %cst_36 {dimension_numbers = #tpu.dot_dimension_numbers<[1], [0], [0], [1], [0, 0, 1, 1], [], []>} : vector<8x72xf32>, vector<72x256xf32>, vector<8x256xf32> -> vector<8x256xf32>
    %cst_37 = arith.constant dense<0.000000e+00> : vector<8xf32>
    %244 = vector.multi_reduction <add>, %243, %cst_37 [1] : vector<8x256xf32> to vector<8xf32>
    %245 = vector.shape_cast %244 : vector<8xf32> to vector<8x1xf32>
    %cst_38 = arith.constant 2.560000e+02 : f32
    %246 = vector.broadcast %cst_38 : f32 to vector<8x1xf32>
    %247 = arith.divf %245, %246 : vector<8x1xf32>
    %248 = vector.broadcast %247 : vector<8x1xf32> to vector<8x256xf32>
    %249 = arith.subf %243, %248 : vector<8x256xf32>
    %250 = arith.mulf %249, %249 : vector<8x256xf32>
    %cst_39 = arith.constant dense<0.000000e+00> : vector<8xf32>
    %251 = vector.multi_reduction <add>, %250, %cst_39 [1] : vector<8x256xf32> to vector<8xf32>
    %252 = vector.shape_cast %251 : vector<8xf32> to vector<8x1xf32>
    %cst_40 = arith.constant 2.560000e+02 : f32
    %253 = vector.broadcast %cst_40 : f32 to vector<8x1xf32>
    %254 = arith.divf %252, %253 : vector<8x1xf32>
    %cst_41 = arith.constant 9.99999974E-6 : f32
    %255 = vector.broadcast %cst_41 : f32 to vector<8x1xf32>
    %256 = arith.addf %254, %255 : vector<8x1xf32>
    %257 = math.rsqrt %256 : vector<8x1xf32>
    %258 = vector.broadcast %257 : vector<8x1xf32> to vector<8x256xf32>
    %259 = arith.mulf %249, %258 : vector<8x256xf32>
    %c0_42 = arith.constant 0 : index
    %c0_43 = arith.constant 0 : index
    %c0_44 = arith.constant 0 : index
    %260 = vector.load %arg6[%c0_42, %c0_43, %c0_44] : memref<1x8x256xf32, #tpu.memory_space<vmem>>, vector<1x8x256xf32>
    %261 = vector.shape_cast %260 : vector<1x8x256xf32> to vector<8x256xf32>
    %262 = vector.shape_cast %259 : vector<8x256xf32> to vector<1x8x256xf32>
    tpu.vector_store %arg6[%c0_42, %c0_43, %c0_44], %262 {strides = array<i32>} : memref<1x8x256xf32, #tpu.memory_space<vmem>>, vector<1x8x256xf32>,
    return
  }
  func.func @transform_0(%arg0: i32) -> (i32, i32, i32) {
    %c0_i32 = arith.constant 0 : i32
    %c0_i32_0 = arith.constant 0 : i32
    %c0_i32_1 = arith.constant 0 : i32
    return %arg0, %c0_i32, %c0_i32_0 : i32, i32, i32
  }
  func.func @transform_1(%arg0: i32) -> (i32, i32) {
    %c0_i32 = arith.constant 0 : i32
    %c0_i32_0 = arith.constant 0 : i32
    %c0_i32_1 = arith.constant 0 : i32
    return %c0_i32, %c0_i32_0 : i32, i32
  }
  func.func @transform_2(%arg0: i32) -> (i32, i32) {
    %c0_i32 = arith.constant 0 : i32
    %c0_i32_0 = arith.constant 0 : i32
    %c0_i32_1 = arith.constant 0 : i32
    return %c0_i32, %c0_i32_0 : i32, i32
  }
  func.func @transform_3(%arg0: i32) -> (i32, i32) {
    %c0_i32 = arith.constant 0 : i32
    %c0_i32_0 = arith.constant 0 : i32
    %c0_i32_1 = arith.constant 0 : i32
    return %c0_i32, %c0_i32_0 : i32, i32
  }
  func.func @transform_4(%arg0: i32) -> (i32, i32) {
    %c0_i32 = arith.constant 0 : i32
    %c0_i32_0 = arith.constant 0 : i32
    %c0_i32_1 = arith.constant 0 : i32
    return %c0_i32, %c0_i32_0 : i32, i32
  }
  func.func @transform_5(%arg0: i32) -> (i32, i32, i32) {
    %c0_i32 = arith.constant 0 : i32
    %c0_i32_0 = arith.constant 0 : i32
    %c0_i32_1 = arith.constant 0 : i32
    return %arg0, %c0_i32, %c0_i32_0 : i32, i32, i32
  }
}

</mosaic_0001>

<llo_original>
// kernel: tpu_custom_call.1
$region0: #{tpu_custom_call.1}
  #allocation0 [shape = 'u32[]', space=smem, size = 0x4, offset = 0x4, fixed_abs, tag = 'smem constant byte address 0x4 - core index']
  #allocation1 [shape = 'u32[72,128]{1,0:T(1,128)}', space=vmem, size = 0x9000, scoped, tag = 'internal scratch']
  %s0 = inlined_call_operand.hbm [shape: f32[2,8,256], index: 0, kind: input, shape index: {}]
  %s1 = inlined_call_operand.hbm [shape: f32[8,72], index: 1, kind: input, shape index: {}]
  %s2 = inlined_call_operand.hbm [shape: f32[8,72], index: 2, kind: input, shape index: {}]
  %s3 = inlined_call_operand.vmem [shape: s32[1,256], index: 3, kind: input, shape index: {}]
  %s4 = inlined_call_operand.hbm [shape: s32[1,256], index: 4, kind: input, shape index: {}]
  %s5 = inlined_call_operand.hbm [shape: f32[2,8,256], index: 5, kind: output, shape index: {}]
  %s6 = sld [smem:[#allocation0]]
  $region69: #{tpu_custom_call.1} parent=0
    _
  %s8 = ssub.s32 1, %s6
  %s9 = scalar_select 0, %s8, %s6
  $region1: #{tpu_custom_call.1} parent=0
    #allocation2 [shape = 'u8[16384]{0}', space=vmem, size = 0x4000, scoped, tag = 'input window, operand 0']
    #allocation3 [shape = 's32[2]{0}', space=sflag, size = 0x8, scoped, tag = 'scoped memory for tpu_custom_call.1']
    #allocation4 [shape = 's32[2]{0}', space=sflag, size = 0x8, scoped, tag = 'scoped memory for tpu_custom_call.1']
    #allocation5 [shape = 'u8[4096]{0}', space=vmem, size = 0x1000, scoped, tag = 'input window, operand 1, single buffered']
    #allocation6 [shape = 's32[1]{0}', space=sflag, size = 0x4, scoped, tag = 'scoped memory for tpu_custom_call.1']
    #allocation7 [shape = 'u8[4096]{0}', space=vmem, size = 0x1000, scoped, tag = 'input window, operand 2, single buffered']
    #allocation8 [shape = 'u8[1024]{0}', space=vmem, size = 0x400, scoped, tag = 'input window, operand 4, single buffered']
    #allocation9 [shape = 's32[1]{0}', space=sflag, size = 0x4, scoped, tag = 'scoped memory for tpu_custom_call.1']
    #allocation10 [shape = 'u8[16384]{0}', space=vmem, size = 0x4000, scoped, tag = 'output window, operand 0']
    %10 = vsyncpa [#allocation3], 0
    %s11 = scalar_lea.sflag [#allocation3], 1
    %12 = vsyncpa %s11, 0
    %13 = vsyncpa [#allocation6], 0
    %14 = vsyncpa [#allocation9], 0
    %15 = vsyncpa [#allocation4], 0
    %s16 = scalar_lea.sflag [#allocation4], 1
    %17 = vsyncpa %s16, 0
    loop: start=0, step=1, limit=4
    $region2: #{tpu_custom_call.1} parent=1 // loop_pre_header
      _
    $region3: #{tpu_custom_call.1} parent=1 // loop_header
      %s19 = sphi 0, %s23
      %p20 = scmp.ge.s32.totalorder %s19, 4
      %s29 = sphi 0, %s31
      %s32 = sphi 0, %s29
      %s33 = sphi 0, %s32
      %s49 = sphi 0, %s33
      %s53 = sphi 0, %s53
      %s55 = sphi 0, %s53
      %s56 = sphi 0, %s55
      %s70 = sphi 0, %s56
      %s74 = sphi 0, %s74
      %s76 = sphi 0, %s74
      %s77 = sphi 0, %s76
      %s91 = sphi 0, %s77
      %s95 = sphi 0, %s95
      %s97 = sphi 0, %s95
      %s98 = sphi 0, %s97
      %s112 = sphi 0, %s98
      %s116 = sphi 0, %s116
      %s118 = sphi 0, %s116
      %s119 = sphi 0, %s118
      %s133 = sphi 0, %s119
      %s139 = sphi 0, %s141
      %s142 = sphi 0, %s139
      %s143 = sphi 0, %s142
      %s159 = sphi 0, %s143
    $region4: #{tpu_custom_call.1} parent=1 // loop_header_branch
      %22 = sbr.rel (%p20) target = $region8
    $region5: #{tpu_custom_call.1} parent=1 // loop_body
      %s24 = ssub.s32 %s19, 1
      %s25 = ssub.s32 %s19, 2
      %s26 = sadd.s32 %s19, 1
      %s27 = ssub.s32 %s19, %s26
      %p28 = scmp.eq.s32.totalorder %s27, 0
      %s30 = sadd.s32 %s29, 1
      %s31 = scalar_select %p28, %s29, %s30
      %p34 = pneg %p28
      %p35 = scmp.eq.s32.totalorder %s19, 1
      %p36 = por %p34, %p35
      %p37 = scmp.ne.s32.totalorder %s29, %s32
      %p38 = scmp.eq.s32.totalorder %s19, 0
      %p39 = por %p37, %p38
      %p40 = scmp.ne.s32.totalorder %s29, %s32
      %p41 = scmp.eq.s32.totalorder %s24, 1
      %p42 = por %p40, %p41
      %p43 = scmp.ne.s32.totalorder %s32, %s33
      %p44 = scmp.eq.s32.totalorder %s24, 0
      %p45 = por %p43, %p44
      %p46 = scmp.ne.s32.totalorder %s32, %s33
      %p47 = scmp.eq.s32.totalorder %s25, 1
      %p48 = por %p46, %p47
      %p50 = scmp.ne.s32.totalorder %s33, %s49
      %p51 = scmp.eq.s32.totalorder %s25, 0
      %p52 = por %p50, %p51
      %s54 = sadd.s32 %s53, 1
      %p57 = scmp.eq.s32.totalorder %s19, 1
      %p58 = scmp.ne.s32.totalorder %s53, %s55
      %p59 = scmp.eq.s32.totalorder %s19, 0
      %p60 = por %p58, %p59
      %p61 = scmp.ne.s32.totalorder %s53, %s55
      %p62 = scmp.eq.s32.totalorder %s24, 1
      %p63 = por %p61, %p62
      %p64 = scmp.ne.s32.totalorder %s55, %s56
      %p65 = scmp.eq.s32.totalorder %s24, 0
      %p66 = por %p64, %p65
      %p67 = scmp.ne.s32.totalorder %s55, %s56
      %p68 = scmp.eq.s32.totalorder %s25, 1
      %p69 = por %p67, %p68
      %p71 = scmp.ne.s32.totalorder %s56, %s70
      %p72 = scmp.eq.s32.totalorder %s25, 0
      %p73 = por %p71, %p72
      %s75 = sadd.s32 %s74, 1
      %p78 = scmp.eq.s32.totalorder %s19, 1
      %p79 = scmp.ne.s32.totalorder %s74, %s76
      %p80 = scmp.eq.s32.totalorder %s19, 0
      %p81 = por %p79, %p80
      %p82 = scmp.ne.s32.totalorder %s74, %s76
      %p83 = scmp.eq.s32.totalorder %s24, 1
      %p84 = por %p82, %p83
      %p85 = scmp.ne.s32.totalorder %s76, %s77
      %p86 = scmp.eq.s32.totalorder %s24, 0
      %p87 = por %p85, %p86
      %p88 = scmp.ne.s32.totalorder %s76, %s77
      %p89 = scmp.eq.s32.totalorder %s25, 1
      %p90 = por %p88, %p89
      %p92 = scmp.ne.s32.totalorder %s77, %s91
      %p93 = scmp.eq.s32.totalorder %s25, 0
      %p94 = por %p92, %p93
      %s96 = sadd.s32 %s95, 1
      %p99 = scmp.eq.s32.totalorder %s19, 1
      %p100 = scmp.ne.s32.totalorder %s95, %s97
      %p101 = scmp.eq.s32.totalorder %s19, 0
      %p102 = por %p100, %p101
      %p103 = scmp.ne.s32.totalorder %s95, %s97
      %p104 = scmp.eq.s32.totalorder %s24, 1
      %p105 = por %p103, %p104
      %p106 = scmp.ne.s32.totalorder %s97, %s98
      %p107 = scmp.eq.s32.totalorder %s24, 0
      %p108 = por %p106, %p107
      %p109 = scmp.ne.s32.totalorder %s97, %s98
      %p110 = scmp.eq.s32.totalorder %s25, 1
      %p111 = por %p109, %p110
      %p113 = scmp.ne.s32.totalorder %s98, %s112
      %p114 = scmp.eq.s32.totalorder %s25, 0
      %p115 = por %p113, %p114
      %s117 = sadd.s32 %s116, 1
      %p120 = scmp.eq.s32.totalorder %s19, 1
      %p121 = scmp.ne.s32.totalorder %s116, %s118
      %p122 = scmp.eq.s32.totalorder %s19, 0
      %p123 = por %p121, %p122
      %p124 = scmp.ne.s32.totalorder %s116, %s118
      %p125 = scmp.eq.s32.totalorder %s24, 1
      %p126 = por %p124, %p125
      %p127 = scmp.ne.s32.totalorder %s118, %s119
      %p128 = scmp.eq.s32.totalorder %s24, 0
      %p129 = por %p127, %p128
      %p130 = scmp.ne.s32.totalorder %s118, %s119
      %p131 = scmp.eq.s32.totalorder %s25, 1
      %p132 = por %p130, %p131
      %p134 = scmp.ne.s32.totalorder %s119, %s133
      %p135 = scmp.eq.s32.totalorder %s25, 0
      %p136 = por %p134, %p135
      %s137 = ssub.s32 %s19, %s26
      %p138 = scmp.eq.s32.totalorder %s137, 0
      %s140 = sadd.s32 %s139, 1
      %s141 = scalar_select %p138, %s139, %s140
      %p144 = pneg %p138
      %p145 = scmp.eq.s32.totalorder %s19, 1
      %p146 = por %p144, %p145
      %p147 = scmp.ne.s32.totalorder %s139, %s142
      %p148 = scmp.eq.s32.totalorder %s19, 0
      %p149 = por %p147, %p148
      %p150 = scmp.ne.s32.totalorder %s139, %s142
      %p151 = scmp.eq.s32.totalorder %s24, 1
      %p152 = por %p150, %p151
      %p153 = scmp.ne.s32.totalorder %s142, %s143
      %p154 = scmp.eq.s32.totalorder %s24, 0
      %p155 = por %p153, %p154
      %p156 = scmp.ne.s32.totalorder %s142, %s143
      %p157 = scmp.eq.s32.totalorder %s25, 1
      %p158 = por %p156, %p157
      %p160 = scmp.ne.s32.totalorder %s143, %s159
      %p161 = scmp.eq.s32.totalorder %s25, 0
      %p162 = por %p160, %p161
      %p163 = scmp.le.s32.totalorder 1, %s19
      %p164 = scmp.lt.s32.totalorder %s19, 3
      %p165 = pnand %p163, %p164
      %p166 = pneg %p165
      // Predicated region
      $region9: #{tpu_custom_call.1} parent=5 // pred_check
        _
      $region10: #{tpu_custom_call.1} parent=5 // pred_check_branch
        %168 = sbr.rel (%p165) target = $region12
      $region11: #{tpu_custom_call.1} parent=5 // pred_region
        %s169 = ssub.s32 %s19, 1
        // Predicated region
        $region13: #{tpu_custom_call.1} parent=11 // pred_check
          %p170 = pneg %p66
        $region14: #{tpu_custom_call.1} parent=11 // pred_check_branch
          %172 = sbr.rel (%p170) target = $region16
        $region15: #{tpu_custom_call.1} parent=11 // pred_region
          %174 = vsyncadd [#allocation6], 0
          %s176 = sshll.u32 %s1, 4
          %s177 = int_to_ptr.hbm [resolvable:$true] %s176
          %s178 = sshll.u32 [#allocation5], 4
          %s179 = int_to_ptr.vmem [resolvable:$true] %s178
          %181 = dma.hbm_to_vmem [thread:$0]  %s177, 128, %s179, [#allocation6]
        $region16: #{tpu_custom_call.1} parent=11 // pred_fallthru
          _
        // Predicated region
        $region17: #{tpu_custom_call.1} parent=11 // pred_check
          %p182 = pneg %p87
        $region18: #{tpu_custom_call.1} parent=11 // pred_check_branch
          %184 = sbr.rel (%p182) target = $region20
        $region19: #{tpu_custom_call.1} parent=11 // pred_region
          %186 = vsyncadd [#allocation6], 0
          %s188 = sshll.u32 %s2, 4
          %s189 = int_to_ptr.hbm [resolvable:$true] %s188
          %s190 = sshll.u32 [#allocation7], 4
          %s191 = int_to_ptr.vmem [resolvable:$true] %s190
          %193 = dma.hbm_to_vmem [thread:$0]  %s189, 128, %s191, [#allocation6]
        $region20: #{tpu_custom_call.1} parent=11 // pred_fallthru
          _
        // Predicated region
        $region21: #{tpu_custom_call.1} parent=11 // pred_check
          %p194 = pneg %p108
        $region22: #{tpu_custom_call.1} parent=11 // pred_check_branch
          %196 = sbr.rel (%p194) target = $region24
        $region23: #{tpu_custom_call.1} parent=11 // pred_region
          _
        $region24: #{tpu_custom_call.1} parent=11 // pred_fallthru
          _
        // Predicated region
        $region25: #{tpu_custom_call.1} parent=11 // pred_check
          %p197 = pneg %p129
        $region26: #{tpu_custom_call.1} parent=11 // pred_check_branch
          %199 = sbr.rel (%p197) target = $region28
        $region27: #{tpu_custom_call.1} parent=11 // pred_region
          %201 = vsyncadd [#allocation9], 0
          %s203 = sshll.u32 %s4, 4
          %s204 = int_to_ptr.hbm [resolvable:$true] %s203
          %s205 = sshll.u32 [#allocation8], 4
          %s206 = int_to_ptr.vmem [resolvable:$true] %s205
          %208 = dma.hbm_to_vmem [thread:$0]  %s204, 32, %s206, [#allocation9]
        $region28: #{tpu_custom_call.1} parent=11 // pred_fallthru
          _
      $region12: #{tpu_custom_call.1} parent=5 // pred_fallthru
        _
      %p209 = scmp.lt.s32.totalorder %s19, 2
      // Predicated region
      $region29: #{tpu_custom_call.1} parent=5 // pred_check
        %p210 = pneg %p209
      $region30: #{tpu_custom_call.1} parent=5 // pred_check_branch
        %212 = sbr.rel (%p210) target = $region32
      $region31: #{tpu_custom_call.1} parent=5 // pred_region
        // Predicated region
        $region33: #{tpu_custom_call.1} parent=31 // pred_check
          %p213 = pneg %p39
        $region34: #{tpu_custom_call.1} parent=31 // pred_check_branch
          %215 = sbr.rel (%p213) target = $region36
        $region35: #{tpu_custom_call.1} parent=31 // pred_region
          %s216 = sand.u32 %s29, 1
          %s217 = scalar_lea.sflag [#allocation3], %s216
          %s218 = sand.u32 %s29, 1
          %s219 = smul.addr %s218, 16
          %s220 = scalar_lea.vmem [#allocation2], %s219
          %222 = vsyncadd %s217, 0
          %s223 = smul.addr %s19, 2
          %s224 = smul.addr %s223, 8
          %s225 = scalar_lea.hbm %s0, %s224
          %s227 = sshll.u32 %s225, 4
          %s228 = int_to_ptr.hbm [resolvable:$true] %s227
          %s229 = sshll.u32 %s220, 4
          %s230 = int_to_ptr.vmem [resolvable:$true] %s229
          %232 = dma.hbm_to_vmem [thread:$0]  %s228, 256, %s230, %s217
        $region36: #{tpu_custom_call.1} parent=31 // pred_fallthru
          _
      $region32: #{tpu_custom_call.1} parent=5 // pred_fallthru
        _
      %p233 = scmp.le.s32.totalorder 1, %s19
      %p234 = scmp.lt.s32.totalorder %s19, 3
      %p235 = pnand %p233, %p234
      %p236 = pneg %p235
      // Predicated region
      $region37: #{tpu_custom_call.1} parent=5 // pred_check
        _
      $region38: #{tpu_custom_call.1} parent=5 // pred_check_branch
        %238 = sbr.rel (%p235) target = $region40
      $region39: #{tpu_custom_call.1} parent=5 // pred_region
        %s239 = ssub.s32 %s19, 1
        %s240 = sand.u32 %s32, 1
        %s241 = scalar_lea.sflag [#allocation3], %s240
        %s242 = sand.u32 %s32, 1
        %s243 = smul.addr %s242, 16
        %s244 = scalar_lea.vmem [#allocation2], %s243
        // Predicated region
        $region41: #{tpu_custom_call.1} parent=39 // pred_check
          %p245 = pneg %p45
        $region42: #{tpu_custom_call.1} parent=39 // pred_check_branch
          %247 = sbr.rel (%p245) target = $region44
        $region43: #{tpu_custom_call.1} parent=39 // pred_region
          %249 = dma.done %s241, 256
        $region44: #{tpu_custom_call.1} parent=39 // pred_fallthru
          _
        // Predicated region
        $region45: #{tpu_custom_call.1} parent=39 // pred_check
          %p250 = pneg %p66
        $region46: #{tpu_custom_call.1} parent=39 // pred_check_branch
          %252 = sbr.rel (%p250) target = $region48
        $region47: #{tpu_custom_call.1} parent=39 // pred_region
          %254 = dma.done [#allocation6], 128
        $region48: #{tpu_custom_call.1} parent=39 // pred_fallthru
          _
        // Predicated region
        $region49: #{tpu_custom_call.1} parent=39 // pred_check
          %p255 = pneg %p87
        $region50: #{tpu_custom_call.1} parent=39 // pred_check_branch
          %257 = sbr.rel (%p255) target = $region52
        $region51: #{tpu_custom_call.1} parent=39 // pred_region
          %259 = dma.done [#allocation6], 128
        $region52: #{tpu_custom_call.1} parent=39 // pred_fallthru
          _
        // Predicated region
        $region53: #{tpu_custom_call.1} parent=39 // pred_check
          %p260 = pneg %p129
        $region54: #{tpu_custom_call.1} parent=39 // pred_check_branch
          %262 = sbr.rel (%p260) target = $region56
        $region55: #{tpu_custom_call.1} parent=39 // pred_region
          %264 = dma.done [#allocation9], 32
        $region56: #{tpu_custom_call.1} parent=39 // pred_fallthru
          _
        %s265 = sand.u32 %s32, 1
        %s266 = scalar_lea.sflag [#allocation3], %s265
        %s267 = sand.u32 %s32, 1
        %s268 = smul.addr %s267, 16
        %s269 = scalar_lea.vmem [#allocation2], %s268
        %p270 = pneg %p45
        %p271 = pneg %p42
        %p272 = pneg %p66
        %p273 = pneg %p63
        %p274 = pneg %p87
        %p275 = pneg %p84
        %p276 = pneg %p108
        %p277 = pneg %p105
        %p278 = pneg %p129
        %p279 = pneg %p126
        %p280 = pneg %p155
        %p281 = pneg %p152
        %s282 = sand.u32 %s142, 1
        %s283 = scalar_lea.sflag [#allocation4], %s282
        %s284 = sand.u32 %s142, 1
        %s285 = smul.addr %s284, 16
        %s286 = scalar_lea.vmem [#allocation10], %s285
        %v287 = vld [vmem:[%s244] sm:$0xff]
        %v288 = vld [vmem:[%s244 + $0x8] sm:$0xff]
        %v289 = vld [vmem:[%s3] sm:$0x3]
        %v290 = vld [vmem:[#allocation8] sm:$0x3]
        %v291 = vld [vmem:[#allocation5] sm:$0xff]
        %293 = vrot.lane.b32.xlu0 %v288, 32
        %v294 = vpop.permute.xlu0 %293
        %297 = vrot.lane.b32.xlu0 %v287, 32
        %v298 = vpop.permute.xlu0 %297
        %vm299 = vcmask 261120
        %v300 = vsel %vm299, %v298, %v294
        %v303 = vsel %vm299, %v294, %v298
        %304 = vrot.lane.b32.xlu0 %v287, 96
        %v305 = vpop.permute.xlu0 %304
        %306 = vrot.lane.b32.xlu0 %v288, 96
        %v307 = vpop.permute.xlu0 %306
        %vm308 = vcmask 785408
        %v309 = vsel %vm308, %v305, %v307
        %v313 = vsel %vm308, %v307, %v305
        %vm314 = vcmp.eq.s32.totalorder %v289, 0
        %v315 = vsel %vm314, 1, 0
        %v316 = vperm.slane %v315, 0
        %v317 = vperm.slane %v315, 1
        %vm318 = vcmp.eq.s32.totalorder %v316, 1
        %vm319 = vcmp.eq.s32.totalorder %v317, 1
        %v320 = vsel %vm318, %v309, %v303
        %v321 = vsel %vm319, %v313, %v300
        %vm322 = vcmp.eq.s32.totalorder %v289, 1
        %v323 = vsel %vm322, 1, 0
        %v324 = vperm.slane %v323, 0
        %v325 = vperm.slane %v323, 1
        %vm326 = vcmp.eq.s32.totalorder %v324, 1
        %vm327 = vcmp.eq.s32.totalorder %v325, 1
        %v328 = vsel %vm326, %v287, %v320
        %v329 = vsel %vm327, %v288, %v321
        %331 = vrot.lane.b32.xlu0 %v329, 2
        %v332 = vpop.permute.xlu0 %331
        %335 = vrot.lane.b32.xlu0 %v328, 2
        %v336 = vpop.permute.xlu0 %335
        %vm337 = vcmask 15360
        %v338 = vsel %vm337, %v336, %v332
        %v341 = vsel %vm337, %v332, %v336
        %342 = vrot.lane.b32.xlu0 %v328, 126
        %v343 = vpop.permute.xlu0 %342
        %344 = vrot.lane.b32.xlu0 %v329, 126
        %v345 = vpop.permute.xlu0 %344
        %vm346 = vcmask 1031168
        %v347 = vsel %vm346, %v343, %v345
        %v351 = vsel %vm346, %v345, %v343
        %vm352 = vcmp.eq.s32.totalorder %v290, 0
        %v353 = vsel %vm352, 1, 0
        %v354 = vperm.slane %v353, 0
        %v355 = vperm.slane %v353, 1
        %vm356 = vcmp.eq.s32.totalorder %v354, 1
        %vm357 = vcmp.eq.s32.totalorder %v355, 1
        %v358 = vsel %vm356, %v347, %v341
        %v359 = vsel %vm357, %v351, %v338
        %vm360 = vcmp.eq.s32.totalorder %v290, 1
        %v361 = vsel %vm360, 1, 0
        %v362 = vperm.slane %v361, 0
        %v363 = vperm.slane %v361, 1
        %vm364 = vcmp.eq.s32.totalorder %v362, 1
        %vm365 = vcmp.eq.s32.totalorder %v363, 1
        %v366 = vsel %vm364, %v328, %v358
        %v367 = vsel %vm365, %v329, %v359
        %vm368 = vcmp.eq.s32.totalorder %v290, 14
        %v369 = vsel %vm368, 1, 0
        %v370 = vperm.slane %v369, 0
        %v371 = vperm.slane %v369, 1
        %vm372 = vcmp.eq.s32.totalorder %v370, 1
        %vm373 = vcmp.eq.s32.totalorder %v371, 1
        %v374 = vsel %vm372, %v328, %v347
        %v375 = vsel %vm373, %v329, %v351
        %vm376 = vcmp.eq.s32.totalorder %v290, 15
        %v377 = vsel %vm376, 1, 0
        %v378 = vperm.slane %v377, 0
        %v379 = vperm.slane %v377, 1
        %vm380 = vcmp.eq.s32.totalorder %v378, 1
        %vm381 = vcmp.eq.s32.totalorder %v379, 1
        %v382 = vsel %vm380, %v341, %v374
        %v383 = vsel %vm381, %v338, %v375
        %384 = vrot.lane.b32.xlu0 %v288, 2
        %v385 = vpop.permute.xlu0 %384
        %387 = vrot.lane.b32.xlu0 %v287, 2
        %v388 = vpop.permute.xlu0 %387
        %v389 = vsel %vm337, %v388, %v385
        %v392 = vsel %vm337, %v385, %v388
        %393 = vrot.lane.b32.xlu0 %v287, 126
        %v394 = vpop.permute.xlu0 %393
        %395 = vrot.lane.b32.xlu0 %v288, 126
        %v396 = vpop.permute.xlu0 %395
        %v397 = vsel %vm346, %v394, %v396
        %v401 = vsel %vm346, %v396, %v394
        %v402 = vsel %vm356, %v397, %v392
        %v403 = vsel %vm357, %v401, %v389
        %v404 = vsel %vm364, %v287, %v402
        %v405 = vsel %vm365, %v288, %v403
        %v406 = vsel %vm372, %v287, %v397
        %v407 = vsel %vm373, %v288, %v401
        %v408 = vsel %vm380, %v392, %v406
        %v409 = vsel %vm381, %v389, %v407
        %vm410 = vcmp.eq.s32.totalorder %v289, 14
        %v411 = vsel %vm410, 1, 0
        %v412 = vperm.slane %v411, 0
        %v413 = vperm.slane %v411, 1
        %vm414 = vcmp.eq.s32.totalorder %v412, 1
        %vm415 = vcmp.eq.s32.totalorder %v413, 1
        %v416 = vsel %vm414, %v287, %v309
        %v417 = vsel %vm415, %v288, %v313
        %vm418 = vcmp.eq.s32.totalorder %v289, 15
        %v419 = vsel %vm418, 1, 0
        %v420 = vperm.slane %v419, 0
        %v421 = vperm.slane %v419, 1
        %vm422 = vcmp.eq.s32.totalorder %v420, 1
        %vm423 = vcmp.eq.s32.totalorder %v421, 1
        %v424 = vsel %vm422, %v303, %v416
        %v425 = vsel %vm423, %v300, %v417
        %427 = vrot.lane.b32.xlu0 %v425, 2
        %v428 = vpop.permute.xlu0 %427
        %431 = vrot.lane.b32.xlu0 %v424, 2
        %v432 = vpop.permute.xlu0 %431
        %v433 = vsel %vm337, %v432, %v428
        %v436 = vsel %vm337, %v428, %v432
        %437 = vrot.lane.b32.xlu0 %v424, 126
        %v438 = vpop.permute.xlu0 %437
        %439 = vrot.lane.b32.xlu0 %v425, 126
        %v440 = vpop.permute.xlu0 %439
        %v441 = vsel %vm346, %v438, %v440
        %v445 = vsel %vm346, %v440, %v438
        %v446 = vsel %vm356, %v441, %v436
        %v447 = vsel %vm357, %v445, %v433
        %v448 = vsel %vm364, %v424, %v446
        %v449 = vsel %vm365, %v425, %v447
        %v450 = vsel %vm372, %v424, %v441
        %v451 = vsel %vm373, %v425, %v445
        %v452 = vsel %vm380, %v436, %v450
        %v453 = vsel %vm381, %v433, %v451
        %vm454 = vcmask 588800
        %v456 = vsel %vm454, %v291, 0
        %458 = vmatpush.msra.mxu0 0.0
        %459 = vmatpush.msra.mxu0 0.0
        %460 = vmatpush.msra.mxu0 0.0
        %461 = vmatpush.msra.mxu0 0.0
        %462 = vmatpush.msra.mxu0 0.0
        %463 = vmatpush.msra.mxu0 0.0
        %464 = vmatpush.msra.mxu0 0.0
        %465 = vmatpush.msra.mxu0 %v452
        %466 = vmatpush.msra.mxu0 %v424
        %467 = vmatpush.msra.mxu0 %v448
        %468 = vmatpush.msra.mxu0 %v408
        %469 = vmatpush.msra.mxu0 %v287
        %470 = vmatpush.msra.mxu0 %v404
        %471 = vmatpush.msra.mxu0 %v382
        %472 = vmatpush.msra.mxu0 %v328
        %473 = vmatpush.msra.mxu0 %v366
        %474 = vmatmul.f32.gmra.mxu0 %v456
        %v475 = vpop.f32.mrf.mxu0
        %v476 = vadd.f32 0.0, %v475
        %477 = vdwg.mxu0
        %478 = vmatpush.msra.mxu0 0.0
        %479 = vmatpush.msra.mxu0 0.0
        %480 = vmatpush.msra.mxu0 0.0
        %481 = vmatpush.msra.mxu0 0.0
        %482 = vmatpush.msra.mxu0 0.0
        %483 = vmatpush.msra.mxu0 0.0
        %484 = vmatpush.msra.mxu0 0.0
        %485 = vmatpush.msra.mxu0 %v453
        %486 = vmatpush.msra.mxu0 %v425
        %487 = vmatpush.msra.mxu0 %v449
        %488 = vmatpush.msra.mxu0 %v409
        %489 = vmatpush.msra.mxu0 %v288
        %490 = vmatpush.msra.mxu0 %v405
        %491 = vmatpush.msra.mxu0 %v383
        %492 = vmatpush.msra.mxu0 %v329
        %493 = vmatpush.msra.mxu0 %v367
        %494 = vmatmul.f32.gmra.mxu0 %v456
        %v495 = vpop.f32.mrf.mxu0
        %v496 = vadd.f32 0.0, %v495
        %497 = vdwg.mxu0
        %v498 = vadd.f32 %v476, %v496
        %499 = vadd.xlane.f32.xlu0 %v498
        %v500 = vpop.xlane.xlu0 %499
        %v501 = vrcp.pop 256.0
        %v502 = vmul.f32 256.0, %v501
        %v503 = vsub.f32 1.0, %v502
        %v504 = vmul.f32 %v501, %v503
        %v505 = vadd.f32 %v501, %v504
        %vm506 = vweird.f32 %v501
        %v507 = vsel %vm506, %v501, %v505
        %v508 = vmul.f32 %v500, %v507
        %v509 = vsub.f32 %v476, %v508
        %v510 = vsub.f32 %v496, %v508
        %v511 = vmul.f32 %v509, %v509
        %v512 = vmul.f32 %v510, %v510
        %v513 = vadd.f32 %v511, %v512
        %514 = vadd.xlane.f32.xlu0 %v513
        %v515 = vpop.xlane.xlu0 %514
        %v516 = vmul.f32 %v515, %v507
        %v517 = vadd.f32 %v516, 1e-05
        %v518 = vrsqrt.pop %v517
        %v519 = vmul.f32 %v518, %v517
        %v520 = vmul.f32 %v519, %v518
        %v521 = vmul.f32 0.5, %v520
        %v522 = vsub.f32 1.5, %v521
        %v523 = vmul.f32 %v518, %v522
        %vm524 = vweird.f32 %v517
        %vm525 = vweird.f32 %v518
        %vm526 = vmor %vm524, %vm525
        %v527 = vsel %vm526, %v518, %v523
        %v528 = vmul.f32 %v509, %v527
        %v529 = vmul.f32 %v510, %v527
        %v530 = vmax.f32 %v528, 0.0
        %v531 = vmax.f32 %v529, 0.0
        %v532 = vld [vmem:[#allocation7] sm:$0xff]
        %534 = vrot.lane.b32.xlu0 %v531, 16
        %v535 = vpop.permute.xlu0 %534
        %538 = vrot.lane.b32.xlu0 %v530, 16
        %v539 = vpop.permute.xlu0 %538
        %vm540 = vcmask 130048
        %v541 = vsel %vm540, %v539, %v535
        %v544 = vsel %vm540, %v535, %v539
        %545 = vrot.lane.b32.xlu0 %v530, 112
        %v546 = vpop.permute.xlu0 %545
        %547 = vrot.lane.b32.xlu0 %v531, 112
        %v548 = vpop.permute.xlu0 %547
        %vm549 = vcmask 916480
        %v550 = vsel %vm549, %v546, %v548
        %v554 = vsel %vm549, %v548, %v546
        %v555 = vsel %vm318, %v550, %v544
        %v556 = vsel %vm319, %v554, %v541
        %558 = vrot.lane.b32.xlu0 %v556, 1
        %v559 = vpop.permute.xlu0 %558
        %562 = vrot.lane.b32.xlu0 %v555, 1
        %v563 = vpop.permute.xlu0 %562
        %vm564 = vcmask 7168
        %v565 = vsel %vm564, %v563, %v559
        %v568 = vsel %vm564, %v559, %v563
        %569 = vrot.lane.b32.xlu0 %v555, 127
        %v570 = vpop.permute.xlu0 %569
        %571 = vrot.lane.b32.xlu0 %v556, 127
        %v572 = vpop.permute.xlu0 %571
        %vm573 = vcmask 1039360
        %v574 = vsel %vm573, %v570, %v572
        %v578 = vsel %vm573, %v572, %v570
        %v579 = vsel %vm356, %v574, %v568
        %v580 = vsel %vm357, %v578, %v565
        %v581 = vsel %vm380, %v568, %v574
        %v582 = vsel %vm381, %v565, %v578
        %583 = vrot.lane.b32.xlu0 %v531, 1
        %v584 = vpop.permute.xlu0 %583
        %586 = vrot.lane.b32.xlu0 %v530, 1
        %v587 = vpop.permute.xlu0 %586
        %v588 = vsel %vm564, %v587, %v584
        %v591 = vsel %vm564, %v584, %v587
        %592 = vrot.lane.b32.xlu0 %v530, 127
        %v593 = vpop.permute.xlu0 %592
        %594 = vrot.lane.b32.xlu0 %v531, 127
        %v595 = vpop.permute.xlu0 %594
        %v596 = vsel %vm573, %v593, %v595
        %v600 = vsel %vm573, %v595, %v593
        %v601 = vsel %vm356, %v596, %v591
        %v602 = vsel %vm357, %v600, %v588
        %v603 = vsel %vm380, %v591, %v596
        %v604 = vsel %vm381, %v588, %v600
        %v605 = vsel %vm422, %v544, %v550
        %v606 = vsel %vm423, %v541, %v554
        %608 = vrot.lane.b32.xlu0 %v606, 1
        %v609 = vpop.permute.xlu0 %608
        %612 = vrot.lane.b32.xlu0 %v605, 1
        %v613 = vpop.permute.xlu0 %612
        %v614 = vsel %vm564, %v613, %v609
        %v617 = vsel %vm564, %v609, %v613
        %618 = vrot.lane.b32.xlu0 %v605, 127
        %v619 = vpop.permute.xlu0 %618
        %620 = vrot.lane.b32.xlu0 %v606, 127
        %v621 = vpop.permute.xlu0 %620
        %v622 = vsel %vm573, %v619, %v621
        %v626 = vsel %vm573, %v621, %v619
        %v627 = vsel %vm356, %v622, %v617
        %v628 = vsel %vm357, %v626, %v614
        %v629 = vsel %vm380, %v617, %v622
        %v630 = vsel %vm381, %v614, %v626
        %v632 = vsel %vm454, %v532, 0
        %634 = vmatpush.msra.mxu0 0.0
        %635 = vmatpush.msra.mxu0 0.0
        %636 = vmatpush.msra.mxu0 0.0
        %637 = vmatpush.msra.mxu0 0.0
        %638 = vmatpush.msra.mxu0 0.0
        %639 = vmatpush.msra.mxu0 0.0
        %640 = vmatpush.msra.mxu0 0.0
        %641 = vmatpush.msra.mxu0 %v629
        %642 = vmatpush.msra.mxu0 %v605
        %643 = vmatpush.msra.mxu0 %v627
        %644 = vmatpush.msra.mxu0 %v603
        %645 = vmatpush.msra.mxu0 %v530
        %646 = vmatpush.msra.mxu0 %v601
        %647 = vmatpush.msra.mxu0 %v581
        %648 = vmatpush.msra.mxu0 %v555
        %649 = vmatpush.msra.mxu0 %v579
        %650 = vmatmul.f32.gmra.mxu0 %v632
        %v651 = vpop.f32.mrf.mxu0
        %v652 = vadd.f32 0.0, %v651
        %653 = vdwg.mxu0
        %654 = vmatpush.msra.mxu0 0.0
        %655 = vmatpush.msra.mxu0 0.0
        %656 = vmatpush.msra.mxu0 0.0
        %657 = vmatpush.msra.mxu0 0.0
        %658 = vmatpush.msra.mxu0 0.0
        %659 = vmatpush.msra.mxu0 0.0
        %660 = vmatpush.msra.mxu0 0.0
        %661 = vmatpush.msra.mxu0 %v630
        %662 = vmatpush.msra.mxu0 %v606
        %663 = vmatpush.msra.mxu0 %v628
        %664 = vmatpush.msra.mxu0 %v604
        %665 = vmatpush.msra.mxu0 %v531
        %666 = vmatpush.msra.mxu0 %v602
        %667 = vmatpush.msra.mxu0 %v582
        %668 = vmatpush.msra.mxu0 %v556
        %669 = vmatpush.msra.mxu0 %v580
        %670 = vmatmul.f32.gmra.mxu0 %v632
        %v671 = vpop.f32.mrf.mxu0
        %v672 = vadd.f32 0.0, %v671
        %673 = vdwg.mxu0
        %v674 = vadd.f32 %v652, %v672
        %675 = vadd.xlane.f32.xlu0 %v674
        %v676 = vpop.xlane.xlu0 %675
        %v677 = vmul.f32 %v676, %v507
        %v678 = vsub.f32 %v652, %v677
        %v679 = vsub.f32 %v672, %v677
        %v680 = vmul.f32 %v678, %v678
        %v681 = vmul.f32 %v679, %v679
        %v682 = vadd.f32 %v680, %v681
        %683 = vadd.xlane.f32.xlu0 %v682
        %v684 = vpop.xlane.xlu0 %683
        %v685 = vmul.f32 %v684, %v507
        %v686 = vadd.f32 %v685, 1e-05
        %v687 = vrsqrt.pop %v686
        %v688 = vmul.f32 %v687, %v686
        %v689 = vmul.f32 %v688, %v687
        %v690 = vmul.f32 0.5, %v689
        %v691 = vsub.f32 1.5, %v690
        %v692 = vmul.f32 %v687, %v691
        %vm693 = vweird.f32 %v686
        %vm694 = vweird.f32 %v687
        %vm695 = vmor %vm693, %vm694
        %v696 = vsel %vm695, %v687, %v692
        %v697 = vmul.f32 %v678, %v696
        %v698 = vmul.f32 %v679, %v696
        %699 = vst [vmem:[%s286] sm:$0xff] %v697
        %700 = vst [vmem:[%s286 + $0x8] sm:$0xff] %v698
        %s701 = sand.u32 %s142, 1
        %s702 = scalar_lea.sflag [#allocation4], %s701
        %s703 = sand.u32 %s142, 1
        %s704 = smul.addr %s703, 16
        %s705 = scalar_lea.vmem [#allocation10], %s704
        // Predicated region
        $region57: #{tpu_custom_call.1} parent=39 // pred_check
          %p706 = pneg %p152
        $region58: #{tpu_custom_call.1} parent=39 // pred_check_branch
          %708 = sbr.rel (%p706) target = $region60
        $region59: #{tpu_custom_call.1} parent=39 // pred_region
          %710 = vsyncadd %s702, 0
          %s711 = smul.addr %s24, 2
          %s712 = smul.addr %s711, 8
          %s713 = scalar_lea.hbm %s5, %s712
          %s715 = sshll.u32 %s705, 4
          %s716 = int_to_ptr.vmem [resolvable:$true] %s715
          %s717 = sshll.u32 %s713, 4
          %s718 = int_to_ptr.hbm [resolvable:$true] %s717
          %720 = dma.vmem_to_hbm [thread:$0]  %s716, 256, %s718, %s702
        $region60: #{tpu_custom_call.1} parent=39 // pred_fallthru
          _
      $region40: #{tpu_custom_call.1} parent=5 // pred_fallthru
        _
      %p721 = scmp.le.s32.totalorder 2, %s19
      // Predicated region
      $region61: #{tpu_custom_call.1} parent=5 // pred_check
        %p722 = pneg %p721
      $region62: #{tpu_custom_call.1} parent=5 // pred_check_branch
        %724 = sbr.rel (%p722) target = $region64
      $region63: #{tpu_custom_call.1} parent=5 // pred_region
        %s725 = ssub.s32 %s19, 2
        // Predicated region
        $region65: #{tpu_custom_call.1} parent=63 // pred_check
          %p726 = pneg %p158
        $region66: #{tpu_custom_call.1} parent=63 // pred_check_branch
          %728 = sbr.rel (%p726) target = $region68
        $region67: #{tpu_custom_call.1} parent=63 // pred_region
          %s729 = sand.u32 %s143, 1
          %s730 = scalar_lea.sflag [#allocation4], %s729
          %s731 = sand.u32 %s143, 1
          %s732 = smul.addr %s731, 16
          %s733 = scalar_lea.vmem [#allocation10], %s732
          %735 = dma.done %s730, 256
        $region68: #{tpu_custom_call.1} parent=63 // pred_fallthru
          _
      $region64: #{tpu_custom_call.1} parent=5 // pred_fallthru
        _
    $region6: #{tpu_custom_call.1} parent=1 // loop_footer
      %s23 = sadd.s32 1, %s19
    $region7: #{tpu_custom_call.1} parent=1 // loop_footer_branch
      %18 = sbr.rel target = $region3
    $region8: #{tpu_custom_call.1} parent=1 // loop_exit
      _
    %736 = vsyncpa [#allocation3], 1
    %s737 = scalar_lea.sflag [#allocation3], 1
    %738 = vsyncpa %s737, 1
    %739 = vsyncpa [#allocation6], 1
    %740 = vsyncpa [#allocation9], 1
    %741 = vsyncpa [#allocation4], 1
    %s742 = scalar_lea.sflag [#allocation4], 1
    %743 = vsyncpa %s742, 1

</llo_original>
